<compile_context>
chip_gen: v5e
topology: v5e:2x2
jax: 0.10.0
libtpu: 0.0.40
codegen_flags: <defaults>
</compile_context>

<pallas_src>
import functools

import jax
import jax.numpy as jnp
from jax.experimental import pallas as pl
from jax.experimental.pallas import tpu as pltpu


def _focal_loss_kernel(logit_ref, target_ref, alpha_ref, out_ref, acc_ref, *,
                       gamma, smooth, num_class, hw, tn):
    """One (batch b, spatial tile j) grid step.

    logit_ref : (C, tn)   probabilities, native dtype (cast to f32 in VMEM)
    target_ref: (1, tn)   int32 class indices
    alpha_ref : (C, 1)    f32 per-class weights
    out_ref   : (1, 128)  f32 per-batch partial sum (scalar broadcast on lanes)
    acc_ref   : (1, tn)   f32 lane-wide accumulator (VMEM scratch)
    """
    j = pl.program_id(1)

    @pl.when(j == 0)
    def _():
        acc_ref[...] = jnp.zeros_like(acc_ref)

    logit = logit_ref[...].astype(jnp.float32)                 # (C, tn)
    tgt = target_ref[...]                                      # (1, tn) int32

    cls = jax.lax.broadcasted_iota(jnp.int32, (num_class, tn), 0)
    is_tgt = cls == tgt                                        # (C, tn) bool

    # one-hot followed by clamp(smooth/(C-1), 1-smooth)
    lo = smooth / max(num_class - 1, 1)
    hi = 1.0 - smooth
    one_hot = jnp.where(is_tgt, jnp.float32(hi), jnp.float32(lo))

    pt = jnp.sum(one_hot * logit, axis=0, keepdims=True) + jnp.float32(smooth)

    # mask for the ragged last spatial tile; also neutralizes any OOB garbage
    # (pt -> 1 gives log(1) = 0 and (1-pt) = 0, so no NaN can leak through)
    col = j * tn + jax.lax.broadcasted_iota(jnp.int32, (1, tn), 1)
    valid = col < hw
    pt = jnp.where(valid, pt, jnp.float32(1.0))

    logpt = jnp.log(pt)

    # alpha gather via masked sublane sum
    alpha_col = alpha_ref[...].astype(jnp.float32)             # (C, 1)
    alpha_t = jnp.sum(jnp.where(is_tgt, alpha_col, 0.0), axis=0, keepdims=True)

    one_minus_pt = 1.0 - pt
    g = float(gamma)
    if g == int(g) and g >= 0:
        # integer gamma: explicit VPU multiplies, no pow (EUP exp/log), no NaN
        # when 1-pt is a hair negative from rounding.
        w = jnp.ones_like(pt)
        for _ in range(int(g)):
            w = w * one_minus_pt
    else:
        w = jnp.power(jnp.maximum(one_minus_pt, 0.0), jnp.float32(g))

    loss = -alpha_t * w * logpt                                # (1, tn)
    acc_ref[...] += jnp.where(valid, loss, jnp.float32(0.0))

    @pl.when(j == pl.num_programs(1) - 1)
    def _():
        # single cross-lane reduce per batch; write lane-dense (1, 128) block.
        out_ref[...] = jnp.broadcast_to(jnp.sum(acc_ref[...]), out_ref.shape)


def _build_alpha(alpha, num_class, balance_index):
    """Replicates the alpha handling in FocalLoss.__init__/forward."""
    if alpha is None:
        a = jnp.ones((num_class,), jnp.float32)
    elif isinstance(alpha, (list, tuple)):
        a = jnp.asarray(alpha, jnp.float32)
        a = a / jnp.sum(a)
    elif isinstance(alpha, float):
        a = jnp.full((num_class,), 1.0 - alpha, jnp.float32)
        a = a.at[balance_index].set(alpha)
    else:
        raise TypeError("Not support alpha type")
    return a


def focal_loss(logit, target, *, alpha=None, gamma=2, balance_index=0,
               smooth=1e-5, tn=2048):
    """logit: (N, C, *spatial) probabilities; target: (N, 1, *spatial) or
    (N, *spatial) int class indices.  Returns scalar mean focal loss
    (size_average=True)."""
    if smooth is not None and (smooth < 0 or smooth > 1.0):
        raise ValueError("smooth value should be in [0,1]")
    if logit.ndim < 3:
        # TODO(synk): 2-D (M, C) inputs would need a transpose to the
        # class-minor layout; only the NC[spatial] path is implemented.
        raise NotImplementedError("focal_loss expects (N, C, spatial...) input")

    n = logit.shape[0]
    num_class = logit.shape[1]
    hw = 1
    for d in logit.shape[2:]:
        hw *= d

    # Free reshapes (no data movement): NCHW -> (N, C, HW), target -> (N,1,HW)
    logit3d = logit.reshape(n, num_class, hw)
    tgt3d = target.reshape(n, 1, hw).astype(jnp.int32)

    # Only if the spatial extent is smaller than one 128-lane vreg row do we
    # pad (tiny inputs; negligible cost).  Otherwise no padding pass at all —
    # the ragged last tile is handled by the in-kernel mask.
    hw_padded = hw
    if hw < 128:
        pad = 128 - hw
        logit3d = jnp.pad(logit3d, ((0, 0), (0, 0), (0, pad)))
        tgt3d = jnp.pad(tgt3d, ((0, 0), (0, 0), (0, pad)))
        hw_padded = 128

    # Lane-dense spatial tile: multiple of 128, as large as useful, but sized
    # so 2x (double-buffered) logit tiles stay well inside the default scoped
    # VMEM on every TPU generation (v5e 16MiB / v6e 32MiB / v7x 32MiB).
    itemsize = jnp.dtype(logit.dtype).itemsize
    tn = max(128, (int(tn) // 128) * 128)
    tn = min(tn, (hw_padded // 128) * 128)
    vmem_budget = 8 * 1024 * 1024
    tn = min(tn, max(128, (vmem_budget // (2 * num_class * itemsize)) // 128 * 128))

    alpha_arr = _build_alpha(alpha, num_class, balance_index).reshape(num_class, 1)

    kernel = functools.partial(
        _focal_loss_kernel,
        gamma=float(gamma), smooth=float(smooth),
        num_class=num_class, hw=hw, tn=tn)

    grid = (n, pl.cdiv(hw_padded, tn))

    partial_sums = pl.pallas_call(
        kernel,
        out_shape=jax.ShapeDtypeStruct((n, 1, 128), jnp.float32),
        grid_spec=pltpu.PrefetchScalarGridSpec(
            num_scalar_prefetch=0,
            grid=grid,
            in_specs=[
                # logits in native dtype; cast to f32 inside the kernel (VMEM)
                pl.BlockSpec((None, num_class, tn), lambda b, j: (b, 0, j)),
                pl.BlockSpec((None, 1, tn), lambda b, j: (b, 0, j)),
                pl.BlockSpec((num_class, 1), lambda b, j: (0, 0)),
            ],
            out_specs=pl.BlockSpec((None, 1, 128), lambda b, j: (b, 0, 0)),
            scratch_shapes=[pltpu.VMEM((1, tn), jnp.float32)],
        ),
        compiler_params=pltpu.CompilerParams(
            dimension_semantics=("parallel", "arbitrary")),
    )(logit3d, tgt3d, alpha_arr)

    total = jnp.sum(partial_sums[:, 0, 0])
    # TODO(synk): size_average=False (per-element loss vector) not implemented;
    # the default size_average=True (mean) is reproduced here.
    return total / jnp.float32(n * hw)


def _focal_loss_ref(logit, target, *, alpha=None, gamma=2, balance_index=0,
                    smooth=1e-5):
    """Pure-JAX reference mirroring the torch code (for verification)."""
    num_class = logit.shape[1]
    n, c, h, w = logit.shape
    logit2d = jnp.transpose(logit, (0, 2, 3, 1)).reshape(-1, c).astype(jnp.float32)
    tgt = jnp.squeeze(target, axis=1) if target.ndim == 4 else target
    idx = tgt.reshape(-1).astype(jnp.int32)
    alpha_arr = _build_alpha(alpha, num_class, balance_index).reshape(-1)
    one_hot = jax.nn.one_hot(idx, num_class, dtype=jnp.float32)
    one_hot = jnp.clip(one_hot, smooth / (num_class - 1), 1.0 - smooth)
    pt = jnp.sum(one_hot * logit2d, axis=1) + smooth
    logpt = jnp.log(pt)
    alpha_t = alpha_arr[idx]
    loss = -alpha_t * jnp.power(1.0 - pt, float(gamma)) * logpt
    return jnp.mean(loss)


if __name__ == "__main__":
    key = jax.random.PRNGKey(0)
    k1, k2 = jax.random.split(key)

    N, C, H, W = 2, 4, 16, 16
    raw = jax.random.normal(k1, (N, C, H, W), jnp.float32)
    logit = jax.nn.softmax(raw, axis=1)                    # probabilities
    target = jax.random.randint(k2, (N, 1, H, W), 0, C, jnp.int32)

    out = focal_loss(logit, target, alpha=None, gamma=2, smooth=1e-5)
    out = jax.block_until_ready(out)

    ref = _focal_loss_ref(logit, target, alpha=None, gamma=2, smooth=1e-5)
    assert jnp.allclose(out, ref, rtol=2e-5, atol=1e-6), (out, ref)

    print("KERNEL_OK")
</pallas_src>

<mosaic_0001>
module attributes {stable_mosaic.version = 11 : i64} {
  func.func @_focal_loss_kernel(%arg0: i32, %arg1: i32, %arg2: memref<1x4x256xf32, #tpu.memory_space<vmem>>, %arg3: memref<1x1x256xi32, #tpu.memory_space<vmem>>, %arg4: memref<4x1xf32, #tpu.memory_space<vmem>>, %arg5: memref<1x1x128xf32, #tpu.memory_space<vmem>>, %arg6: memref<1x256xf32, #tpu.memory_space<vmem>>) attributes {dimension_semantics = [#tpu.dimension_semantics<parallel>, #tpu.dimension_semantics<arbitrary>], iteration_bounds = array<i64: 2, 1>, scalar_prefetch = 0 : i64, scratch_operands = 1 : i64, tpu.core_type = #tpu.core_type<tc>, window_params = [{transform_indices = @transform_0, window_bounds = array<i64: 1, 4, 256>}, {transform_indices = @transform_1, window_bounds = array<i64: 1, 1, 256>}, {pipeline_mode = #tpu.pipeline_mode<synchronous>, transform_indices = @transform_2, window_bounds = array<i64: 4, 1>}, {transform_indices = @transform_3, window_bounds = array<i64: 1, 1, 128>}]} {
    %c0_i32 = arith.constant 0 : i32
    %0 = arith.cmpi eq, %arg1, %c0_i32 : i32
    %1 = arith.extui %0 : i1 to i32
    %c0_i32_0 = arith.constant 0 : i32
    %2 = arith.cmpi ne, %1, %c0_i32_0 : i32
    scf.if %2 {
      %cst_25 = arith.constant 0.000000e+00 : f32
      %51 = vector.broadcast %cst_25 : f32 to vector<1x256xf32>
      %c0_26 = arith.constant 0 : index
      %c0_27 = arith.constant 0 : index
      %52 = vector.load %arg6[%c0_26, %c0_27] : memref<1x256xf32, #tpu.memory_space<vmem>>, vector<1x256xf32>
      tpu.vector_store %arg6[%c0_26, %c0_27], %51 {strides = array<i32>} : memref<1x256xf32, #tpu.memory_space<vmem>>, vector<1x256xf32>,
    } else {
    }
    %c0 = arith.constant 0 : index
    %c0_1 = arith.constant 0 : index
    %c0_2 = arith.constant 0 : index
    %3 = vector.load %arg2[%c0, %c0_1, %c0_2] : memref<1x4x256xf32, #tpu.memory_space<vmem>>, vector<1x4x256xf32>
    %4 = vector.shape_cast %3 : vector<1x4x256xf32> to vector<4x256xf32>
    %c0_3 = arith.constant 0 : index
    %c0_4 = arith.constant 0 : index
    %c0_5 = arith.constant 0 : index
    %5 = vector.load %arg3[%c0_3, %c0_4, %c0_5] : memref<1x1x256xi32, #tpu.memory_space<vmem>>, vector<1x1x256xi32>
    %6 = vector.shape_cast %5 : vector<1x1x256xi32> to vector<1x256xi32>
    %7 = tpu.iota {dimensions = array<i32: 0>} : vector<4x256xi32>
    %8 = vector.broadcast %6 : vector<1x256xi32> to vector<4x256xi32>
    %9 = arith.cmpi eq, %7, %8 : vector<4x256xi32>
    %cst = arith.constant 0.999989986 : f32
    %cst_6 = arith.constant 3.33333332E-6 : f32
    %10 = vector.broadcast %cst : f32 to vector<4x256xf32>
    %11 = vector.broadcast %cst_6 : f32 to vector<4x256xf32>
    %12 = arith.select %9, %10, %11 : vector<4x256xi1>, vector<4x256xf32>
    %13 = arith.mulf %12, %4 : vector<4x256xf32>
    %cst_7 = arith.constant dense<0.000000e+00> : vector<256xf32>
    %14 = vector.multi_reduction <add>, %13, %cst_7 [0] : vector<4x256xf32> to vector<256xf32>
    %15 = vector.shape_cast %14 : vector<256xf32> to vector<1x256xf32>
    %cst_8 = arith.constant 9.99999974E-6 : f32
    %16 = vector.broadcast %cst_8 : f32 to vector<1x256xf32>
    %17 = arith.addf %15, %16 : vector<1x256xf32>
    %c256_i32 = arith.constant 256 : i32
    %18 = arith.muli %arg1, %c256_i32 : i32
    %19 = tpu.iota {dimensions = array<i32: 1>} : vector<1x256xi32>
    %20 = vector.broadcast %18 : i32 to vector<1x256xi32>
    %21 = arith.addi %20, %19 : vector<1x256xi32>
    %c256_i32_9 = arith.constant 256 : i32
    %22 = vector.broadcast %c256_i32_9 : i32 to vector<1x256xi32>
    %23 = arith.cmpi slt, %21, %22 : vector<1x256xi32>
    %cst_10 = arith.constant 1.000000e+00 : f32
    %24 = vector.broadcast %cst_10 : f32 to vector<1x256xf32>
    %25 = arith.select %23, %17, %24 : vector<1x256xi1>, vector<1x256xf32>
    %26 = math.log %25 : vector<1x256xf32>
    %c0_11 = arith.constant 0 : index
    %c0_12 = arith.constant 0 : index
    %27 = vector.load %arg4[%c0_11, %c0_12] : memref<4x1xf32, #tpu.memory_space<vmem>>, vector<4x1xf32>
    %cst_13 = arith.constant 0.000000e+00 : f32
    %28 = vector.shape_cast %27 : vector<4x1xf32> to vector<4x1xf32>
    %29 = vector.broadcast %28 : vector<4x1xf32> to vector<4x256xf32>
    %30 = vector.broadcast %cst_13 : f32 to vector<4x256xf32>
    %31 = arith.select %9, %29, %30 : vector<4x256xi1>, vector<4x256xf32>
    %cst_14 = arith.constant dense<0.000000e+00> : vector<256xf32>
    %32 = vector.multi_reduction <add>, %31, %cst_14 [0] : vector<4x256xf32> to vector<256xf32>
    %33 = vector.shape_cast %32 : vector<256xf32> to vector<1x256xf32>
    %cst_15 = arith.constant 1.000000e+00 : f32
    %34 = vector.broadcast %cst_15 : f32 to vector<1x256xf32>
    %35 = arith.subf %34, %25 : vector<1x256xf32>
    %cst_16 = arith.constant 1.000000e+00 : f32
    %36 = vector.broadcast %cst_16 : f32 to vector<1x256xf32>
    %37 = arith.mulf %36, %35 : vector<1x256xf32>
    %38 = arith.mulf %37, %35 : vector<1x256xf32>
    %cst_17 = arith.constant 0.000000e+00 : f32
    %39 = vector.broadcast %cst_17 : f32 to vector<1x256xf32>
    %40 = arith.subf %39, %33 : vector<1x256xf32>
    %41 = arith.mulf %40, %38 : vector<1x256xf32>
    %42 = arith.mulf %41, %26 : vector<1x256xf32>
    %c0_18 = arith.constant 0 : index
    %c0_19 = arith.constant 0 : index
    %43 = vector.load %arg6[%c0_18, %c0_19] : memref<1x256xf32, #tpu.memory_space<vmem>>, vector<1x256xf32>
    %cst_20 = arith.constant 0.000000e+00 : f32
    %44 = vector.broadcast %cst_20 : f32 to vector<1x256xf32>
    %45 = arith.select %23, %42, %44 : vector<1x256xi1>, vector<1x256xf32>
    %46 = arith.addf %43, %45 : vector<1x256xf32>
    %c0_21 = arith.constant 0 : index
    %c0_22 = arith.constant 0 : index
    %47 = vector.load %arg6[%c0_21, %c0_22] : memref<1x256xf32, #tpu.memory_space<vmem>>, vector<1x256xf32>
    tpu.vector_store %arg6[%c0_21, %c0_22], %46 {strides = array<i32>} : memref<1x256xf32, #tpu.memory_space<vmem>>, vector<1x256xf32>,
    %c0_i32_23 = arith.constant 0 : i32
    %48 = arith.cmpi eq, %arg1, %c0_i32_23 : i32
    %49 = arith.extui %48 : i1 to i32
    %c0_i32_24 = arith.constant 0 : i32
    %50 = arith.cmpi ne, %49, %c0_i32_24 : i32
    scf.if %50 {
      %c0_25 = arith.constant 0 : index
      %c0_26 = arith.constant 0 : index
      %51 = vector.load %arg6[%c0_25, %c0_26] : memref<1x256xf32, #tpu.memory_space<vmem>>, vector<1x256xf32>
      %52 = vector.shape_cast %51 : vector<1x256xf32> to vector<1x1x256xf32>
      %cst_27 = arith.constant dense<0.000000e+00> : vector<1xf32>
      %53 = vector.multi_reduction <add>, %52, %cst_27 [1, 2] : vector<1x1x256xf32> to vector<1xf32>
      %54 = vector.shape_cast %53 : vector<1xf32> to vector<1x1x1xf32>
      %55 = vector.extract %54[0, 0, 0] : f32 from vector<1x1x1xf32>
      %56 = vector.broadcast %55 : f32 to vector<1x128xf32>
      %c0_28 = arith.constant 0 : index
      %c0_29 = arith.constant 0 : index
      %c0_30 = arith.constant 0 : index
      %57 = vector.load %arg5[%c0_28, %c0_29, %c0_30] : memref<1x1x128xf32, #tpu.memory_space<vmem>>, vector<1x1x128xf32>
      %58 = vector.shape_cast %57 : vector<1x1x128xf32> to vector<1x128xf32>
      %59 = vector.shape_cast %56 : vector<1x128xf32> to vector<1x1x128xf32>
      tpu.vector_store %arg5[%c0_28, %c0_29, %c0_30], %59 {strides = array<i32>} : memref<1x1x128xf32, #tpu.memory_space<vmem>>, vector<1x1x128xf32>,
    } else {
    }
    return
  }
  func.func @transform_0(%arg0: i32, %arg1: i32) -> (i32, i32, i32) {
    %c0_i32 = arith.constant 0 : i32
    %c0_i32_0 = arith.constant 0 : i32
    return %arg0, %c0_i32, %arg1 : i32, i32, i32
  }
  func.func @transform_1(%arg0: i32, %arg1: i32) -> (i32, i32, i32) {
    %c0_i32 = arith.constant 0 : i32
    %c0_i32_0 = arith.constant 0 : i32
    return %arg0, %c0_i32, %arg1 : i32, i32, i32
  }
  func.func @transform_2(%arg0: i32, %arg1: i32) -> (i32, i32) {
    %c0_i32 = arith.constant 0 : i32
    %c0_i32_0 = arith.constant 0 : i32
    %c0_i32_1 = arith.constant 0 : i32
    return %c0_i32, %c0_i32_0 : i32, i32
  }
  func.func @transform_3(%arg0: i32, %arg1: i32) -> (i32, i32, i32) {
    %c0_i32 = arith.constant 0 : i32
    %c0_i32_0 = arith.constant 0 : i32
    %c0_i32_1 = arith.constant 0 : i32
    return %arg0, %c0_i32, %c0_i32_0 : i32, i32, i32
  }
}

</mosaic_0001>

<llo_original>
// kernel: tpu_custom_call.1
$region0: #{tpu_custom_call.1}
  #allocation0 [shape = 'u32[]', space=smem, size = 0x4, offset = 0x4, fixed_abs, tag = 'smem constant byte address 0x4 - core index']
  #allocation1 [shape = 'u32[72,128]{1,0:T(1,128)}', space=vmem, size = 0x9000, scoped, tag = 'internal scratch']
  #allocation2 [shape = 'f32[1,256]{1,0:T(1,128)}', space=vmem, size = 0x400, scoped, tag = 'scratch operand']
  %s0 = inlined_call_operand.hbm [shape: f32[2,4,256], index: 0, kind: input, shape index: {}]
  %s1 = inlined_call_operand.vmem [shape: s32[2,1,256], index: 1, kind: input, shape index: {}]
  %s2 = inlined_call_operand.vmem [shape: f32[4,1], index: 2, kind: input, shape index: {}]
  %s3 = inlined_call_operand.hbm [shape: f32[2,1,128], index: 3, kind: output, shape index: {}]
  %s4 = sld [smem:[#allocation0]]
  $region57: #{tpu_custom_call.1} parent=0
    _
  %s6 = ssub.s32 1, %s4
  %s7 = scalar_select 0, %s6, %s4
  $region1: #{tpu_custom_call.1} parent=0
    #allocation3 [shape = 'u8[8192]{0}', space=vmem, size = 0x2000, scoped, tag = 'input window, operand 0']
    #allocation4 [shape = 's32[2]{0}', space=sflag, size = 0x8, scoped, tag = 'scoped memory for tpu_custom_call.1']
    #allocation5 [shape = 's32[2]{0}', space=sflag, size = 0x8, scoped, tag = 'scoped memory for tpu_custom_call.1']
    #allocation6 [shape = 'u8[1024]{0}', space=vmem, size = 0x400, scoped, tag = 'output window, operand 0']
    %8 = vsyncpa [#allocation4], 0
    %s9 = scalar_lea.sflag [#allocation4], 1
    %10 = vsyncpa %s9, 0
    %11 = vsyncpa [#allocation5], 0
    %s12 = scalar_lea.sflag [#allocation5], 1
    %13 = vsyncpa %s12, 0
    loop: start=0, step=1, limit=4
    $region2: #{tpu_custom_call.1} parent=1 // loop_pre_header
      _
    $region3: #{tpu_custom_call.1} parent=1 // loop_header
      %s15 = sphi 0, %s19
      %p16 = scmp.ge.s32.totalorder %s15, 4
      %s22 = sphi 0, %s34
      %s23 = sphi 0, %s30
      %s24 = sphi 0, %s22
      %s25 = sphi 0, %s23
      %s26 = sphi 0, %s24
      %s27 = sphi 0, %s25
      %s39 = sphi 0, %s41
      %s42 = sphi 0, %s39
      %s43 = sphi 0, %s42
      %s59 = sphi 0, %s43
      %s67 = sphi 0, %s69
      %s70 = sphi 0, %s67
      %s71 = sphi 0, %s70
      %s87 = sphi 0, %s71
      %s91 = sphi 0, %s91
      %s93 = sphi 0, %s91
      %s94 = sphi 0, %s93
      %s108 = sphi 0, %s94
      %s114 = sphi 0, %s116
      %s117 = sphi 0, %s114
      %s118 = sphi 0, %s117
      %s134 = sphi 0, %s118
    $region4: #{tpu_custom_call.1} parent=1 // loop_header_branch
      %18 = sbr.rel (%p16) target = $region8
    $region5: #{tpu_custom_call.1} parent=1 // loop_body
      %s20 = ssub.s32 %s15, 1
      %s21 = ssub.s32 %s15, 2
      %s28 = sadd.s32 1, %s23
      %p29 = scmp.ge.s32.totalorder %s28, 1
      %s30 = scalar_select %p29, 0, %s28
      %s31 = sadd.s32 1, %s22
      %s32 = scalar_select %p29, %s31, %s22
      %p33 = scmp.ge.s32.totalorder %s32, 2
      %s34 = scalar_select %p33, 0, %s32
      %s35 = ssub.s32 %s22, %s34
      %s36 = ssub.s32 %s23, %s30
      %s37 = sor.u32 %s35, %s36
      %p38 = scmp.eq.s32.totalorder %s37, 0
      %s40 = sadd.s32 %s39, 1
      %s41 = scalar_select %p38, %s39, %s40
      %p44 = pneg %p38
      %p45 = scmp.eq.s32.totalorder %s15, 1
      %p46 = por %p44, %p45
      %p47 = scmp.ne.s32.totalorder %s39, %s42
      %p48 = scmp.eq.s32.totalorder %s15, 0
      %p49 = por %p47, %p48
      %p50 = scmp.ne.s32.totalorder %s39, %s42
      %p51 = scmp.eq.s32.totalorder %s20, 1
      %p52 = por %p50, %p51
      %p53 = scmp.ne.s32.totalorder %s42, %s43
      %p54 = scmp.eq.s32.totalorder %s20, 0
      %p55 = por %p53, %p54
      %p56 = scmp.ne.s32.totalorder %s42, %s43
      %p57 = scmp.eq.s32.totalorder %s21, 1
      %p58 = por %p56, %p57
      %p60 = scmp.ne.s32.totalorder %s43, %s59
      %p61 = scmp.eq.s32.totalorder %s21, 0
      %p62 = por %p60, %p61
      %s63 = ssub.s32 %s22, %s34
      %s64 = ssub.s32 %s23, %s30
      %s65 = sor.u32 %s63, %s64
      %p66 = scmp.eq.s32.totalorder %s65, 0
      %s68 = sadd.s32 %s67, 1
      %s69 = scalar_select %p66, %s67, %s68
      %p72 = pneg %p66
      %p73 = scmp.eq.s32.totalorder %s15, 1
      %p74 = por %p72, %p73
      %p75 = scmp.ne.s32.totalorder %s67, %s70
      %p76 = scmp.eq.s32.totalorder %s15, 0
      %p77 = por %p75, %p76
      %p78 = scmp.ne.s32.totalorder %s67, %s70
      %p79 = scmp.eq.s32.totalorder %s20, 1
      %p80 = por %p78, %p79
      %p81 = scmp.ne.s32.totalorder %s70, %s71
      %p82 = scmp.eq.s32.totalorder %s20, 0
      %p83 = por %p81, %p82
      %p84 = scmp.ne.s32.totalorder %s70, %s71
      %p85 = scmp.eq.s32.totalorder %s21, 1
      %p86 = por %p84, %p85
      %p88 = scmp.ne.s32.totalorder %s71, %s87
      %p89 = scmp.eq.s32.totalorder %s21, 0
      %p90 = por %p88, %p89
      %s92 = sadd.s32 %s91, 1
      %p95 = scmp.eq.s32.totalorder %s15, 1
      %p96 = scmp.ne.s32.totalorder %s91, %s93
      %p97 = scmp.eq.s32.totalorder %s15, 0
      %p98 = por %p96, %p97
      %p99 = scmp.ne.s32.totalorder %s91, %s93
      %p100 = scmp.eq.s32.totalorder %s20, 1
      %p101 = por %p99, %p100
      %p102 = scmp.ne.s32.totalorder %s93, %s94
      %p103 = scmp.eq.s32.totalorder %s20, 0
      %p104 = por %p102, %p103
      %p105 = scmp.ne.s32.totalorder %s93, %s94
      %p106 = scmp.eq.s32.totalorder %s21, 1
      %p107 = por %p105, %p106
      %p109 = scmp.ne.s32.totalorder %s94, %s108
      %p110 = scmp.eq.s32.totalorder %s21, 0
      %p111 = por %p109, %p110
      %s112 = ssub.s32 %s22, %s34
      %p113 = scmp.eq.s32.totalorder %s112, 0
      %s115 = sadd.s32 %s114, 1
      %s116 = scalar_select %p113, %s114, %s115
      %p119 = pneg %p113
      %p120 = scmp.eq.s32.totalorder %s15, 1
      %p121 = por %p119, %p120
      %p122 = scmp.ne.s32.totalorder %s114, %s117
      %p123 = scmp.eq.s32.totalorder %s15, 0
      %p124 = por %p122, %p123
      %p125 = scmp.ne.s32.totalorder %s114, %s117
      %p126 = scmp.eq.s32.totalorder %s20, 1
      %p127 = por %p125, %p126
      %p128 = scmp.ne.s32.totalorder %s117, %s118
      %p129 = scmp.eq.s32.totalorder %s20, 0
      %p130 = por %p128, %p129
      %p131 = scmp.ne.s32.totalorder %s117, %s118
      %p132 = scmp.eq.s32.totalorder %s21, 1
      %p133 = por %p131, %p132
      %p135 = scmp.ne.s32.totalorder %s118, %s134
      %p136 = scmp.eq.s32.totalorder %s21, 0
      %p137 = por %p135, %p136
      %p138 = scmp.le.s32.totalorder 1, %s15
      %p139 = scmp.lt.s32.totalorder %s15, 3
      %p140 = pnand %p138, %p139
      %p141 = pneg %p140
      // Predicated region
      $region9: #{tpu_custom_call.1} parent=5 // pred_check
        _
      $region10: #{tpu_custom_call.1} parent=5 // pred_check_branch
        %143 = sbr.rel (%p140) target = $region12
      $region11: #{tpu_custom_call.1} parent=5 // pred_region
        %s144 = ssub.s32 %s15, 1
        // Predicated region
        $region13: #{tpu_custom_call.1} parent=11 // pred_check
          %p145 = pneg %p104
        $region14: #{tpu_custom_call.1} parent=11 // pred_check_branch
          %147 = sbr.rel (%p145) target = $region16
        $region15: #{tpu_custom_call.1} parent=11 // pred_region
          _
        $region16: #{tpu_custom_call.1} parent=11 // pred_fallthru
          _
      $region12: #{tpu_custom_call.1} parent=5 // pred_fallthru
        _
      %p148 = scmp.lt.s32.totalorder %s15, 2
      // Predicated region
      $region17: #{tpu_custom_call.1} parent=5 // pred_check
        %p149 = pneg %p148
      $region18: #{tpu_custom_call.1} parent=5 // pred_check_branch
        %151 = sbr.rel (%p149) target = $region20
      $region19: #{tpu_custom_call.1} parent=5 // pred_region
        // Predicated region
        $region21: #{tpu_custom_call.1} parent=19 // pred_check
          %p152 = pneg %p49
        $region22: #{tpu_custom_call.1} parent=19 // pred_check_branch
          %154 = sbr.rel (%p152) target = $region24
        $region23: #{tpu_custom_call.1} parent=19 // pred_region
          %s155 = sand.u32 %s39, 1
          %s156 = scalar_lea.sflag [#allocation4], %s155
          %s157 = sand.u32 %s39, 1
          %s158 = smul.addr %s157, 8
          %s159 = scalar_lea.vmem [#allocation3], %s158
          %s160 = smul.u32 2, %s23
          %162 = vsyncadd %s156, 0
          %s163 = smul.addr %s22, 2
          %s164 = sadd.s32 %s160, %s163
          %s165 = smul.addr %s164, 4
          %s166 = scalar_lea.hbm %s0, %s165
          %s168 = sshll.u32 %s166, 4
          %s169 = int_to_ptr.hbm [resolvable:$true] %s168
          %s170 = sshll.u32 %s159, 4
          %s171 = int_to_ptr.vmem [resolvable:$true] %s170
          %173 = dma.hbm_to_vmem [thread:$0]  %s169, 128, %s171, %s156
        $region24: #{tpu_custom_call.1} parent=19 // pred_fallthru
          _
        // Predicated region
        $region25: #{tpu_custom_call.1} parent=19 // pred_check
          %p174 = pneg %p77
        $region26: #{tpu_custom_call.1} parent=19 // pred_check_branch
          %176 = sbr.rel (%p174) target = $region28
        $region27: #{tpu_custom_call.1} parent=19 // pred_region
          %s177 = smul.u32 2, %s23
          %p178 = scmp.lt.s32.totalorder %s22, 1
          %s179 = scalar_select %p178, %s22, 1
          %p180 = scmp.lt.s32.totalorder %s177, 1
          %s181 = scalar_select %p180, %s177, 1
          %s182 = smul.addr %s179, 2
          %s183 = sadd.s32 %s181, %s182
          %s184 = scalar_lea.vmem %s1, %s183
          %s185 = smul.u32 2, %s23
        $region28: #{tpu_custom_call.1} parent=19 // pred_fallthru
          _
      $region20: #{tpu_custom_call.1} parent=5 // pred_fallthru
        _
      %p186 = scmp.le.s32.totalorder 1, %s15
      %p187 = scmp.lt.s32.totalorder %s15, 3
      %p188 = pnand %p186, %p187
      %p189 = pneg %p188
      // Predicated region
      $region29: #{tpu_custom_call.1} parent=5 // pred_check
        _
      $region30: #{tpu_custom_call.1} parent=5 // pred_check_branch
        %191 = sbr.rel (%p188) target = $region32
      $region31: #{tpu_custom_call.1} parent=5 // pred_region
        %s192 = ssub.s32 %s15, 1
        %s193 = sand.u32 %s42, 1
        %s194 = scalar_lea.sflag [#allocation4], %s193
        %s195 = sand.u32 %s42, 1
        %s196 = smul.addr %s195, 8
        %s197 = scalar_lea.vmem [#allocation3], %s196
        // Predicated region
        $region33: #{tpu_custom_call.1} parent=31 // pred_check
          %p198 = pneg %p55
        $region34: #{tpu_custom_call.1} parent=31 // pred_check_branch
          %200 = sbr.rel (%p198) target = $region36
        $region35: #{tpu_custom_call.1} parent=31 // pred_region
          %202 = dma.done %s194, 128
        $region36: #{tpu_custom_call.1} parent=31 // pred_fallthru
          _
        %s203 = sand.u32 %s42, 1
        %s204 = scalar_lea.sflag [#allocation4], %s203
        %s205 = sand.u32 %s42, 1
        %s206 = smul.addr %s205, 8
        %s207 = scalar_lea.vmem [#allocation3], %s206
        %p208 = pneg %p55
        %p209 = pneg %p52
        %s210 = smul.u32 2, %s25
        %p211 = scmp.lt.s32.totalorder %s24, 1
        %s212 = scalar_select %p211, %s24, 1
        %p213 = scmp.lt.s32.totalorder %s210, 1
        %s214 = scalar_select %p213, %s210, 1
        %s215 = smul.addr %s212, 2
        %s216 = sadd.s32 %s214, %s215
        %s217 = scalar_lea.vmem %s1, %s216
        %p218 = pneg %p83
        %p219 = pneg %p80
        %p220 = pneg %p104
        %p221 = pneg %p101
        %p222 = pneg %p130
        %p223 = pneg %p127
        %s224 = sand.u32 %s117, 1
        %s225 = scalar_lea.sflag [#allocation5], %s224
        %s226 = sand.u32 %s117, 1
        %s227 = scalar_lea.vmem [#allocation6], %s226
        %s228 = smul.u32 2, %s25
        %s229 = smul.u32 2, %s25
        %p230 = scmp.lt.s32.totalorder %s24, 1
        %s231 = scalar_select %p230, %s24, 1
        %p232 = scmp.lt.s32.totalorder %s229, 1
        %s233 = scalar_select %p232, %s229, 1
        %s234 = smul.addr %s231, 2
        %s235 = sadd.s32 %s233, %s234
        %s236 = scalar_lea.vmem %s1, %s235
        %s237 = smul.u32 2, %s25
        %p238 = scmp.eq.s32.totalorder %s25, 0
        // Predicated region
        $region37: #{tpu_custom_call.1} parent=31 // pred_check
          %p239 = pneg %p238
        $region38: #{tpu_custom_call.1} parent=31 // pred_check_branch
          %241 = sbr.rel (%p239) target = $region40
        $region39: #{tpu_custom_call.1} parent=31 // pred_region
          %v242 = vlaneseq
          %vm243 = vcmp.ge.s32.totalorder %v242, 0
          %vm244 = vcmp.lt.s32.totalorder %v242, 256
          %vm245 = vmand %vm243, %vm244
          %246 = vst.msk [vmem:[#allocation2] sm:$0x3] %vm245, 0.0
        $region40: #{tpu_custom_call.1} parent=31 // pred_fallthru
          _
        %v247 = vld [vmem:[%s197] sm:$0xff]
        %v248 = vld [vmem:[%s236] sm:$0x3]
        %v249 = vlaneseq
        %v250 = vshrl.u32 %v249, 7
        %v251 = vperm.slane %v248, 0
        %v252 = vperm.slane %v248, 1
        %vm253 = vcmp.eq.s32.totalorder %v250, %v251
        %vm254 = vcmp.eq.s32.totalorder %v250, %v252
        %v255 = vsel %vm253, 0.99999, 3.3333333e-06
        %v256 = vsel %vm254, 0.99999, 3.3333333e-06
        %258 = vst [vmem:[#allocation1] ss:$2 sm:$0xff] %v247
        %v259 = vld.sshfl [vmem:[#allocation1] sm:$0xff pattern:$0x75316420]
        %v260 = vld.sshfl [vmem:[#allocation1 + $0x8] sm:$0xff pattern:$0x75316420]
        %v263 = vmul.f32 %v255, %v259
        %v264 = vmul.f32 %v256, %v260
        %vm265 = vcmask 1043456
        %v266 = vsel %vm265, %v263, 0.0
        %v267 = vrot.slane %v266, 4
        %v268 = vadd.f32 %v266, %v267
        %v269 = vrot.slane %v268, 2
        %v270 = vadd.f32 %v268, %v269
        %v271 = vrot.slane %v270, 1
        %v272 = vadd.f32 %v270, %v271
        %v273 = vsel %vm265, %v264, 0.0
        %v274 = vrot.slane %v273, 4
        %v275 = vadd.f32 %v273, %v274
        %v276 = vrot.slane %v275, 2
        %v277 = vadd.f32 %v275, %v276
        %v278 = vrot.slane %v277, 1
        %v279 = vadd.f32 %v277, %v278
        %v280 = vadd.f32 %v272, 1e-05
        %v281 = vadd.f32 %v279, 1e-05
        %s282 = smul.u32 %s25, 256
        %v283 = vlaneseq
        %v284 = vand.u32 %v283, 127
        %v285 = vadd.s32 %v284, 128
        %v286 = vstv %s282
        %v287 = vadd.s32 %v286, %v284
        %v288 = vadd.s32 %v286, %v285
        %vm289 = vcmp.lt.s32.totalorder %v287, 256
        %vm290 = vcmp.lt.s32.totalorder %v288, 256
        %v291 = vsel %vm289, %v280, 1.0
        %v292 = vsel %vm290, %v281, 1.0
        %v293 = vlog2.pop %v291
        %v294 = vmul.f32 %v293, 0.6931472
        %v295 = vlog2.pop %v292
        %v296 = vmul.f32 %v295, 0.6931472
        %v297 = vld [vmem:[%s2] sm:$0xf]
        %299 = vset.pattern.permute.xlu0 0
        %300 = vperm.xlu0 %299, %v297
        %v301 = vpop.permute.xlu0 %300
        %v303 = vsel %vm253, %v301, 0.0
        %v304 = vsel %vm254, %v301, 0.0
        %v305 = vsel %vm265, %v303, 0.0
        %v306 = vrot.slane %v305, 4
        %v307 = vadd.f32 %v305, %v306
        %v308 = vrot.slane %v307, 2
        %v309 = vadd.f32 %v307, %v308
        %v310 = vrot.slane %v309, 1
        %v311 = vadd.f32 %v309, %v310
        %v312 = vsel %vm265, %v304, 0.0
        %v313 = vrot.slane %v312, 4
        %v314 = vadd.f32 %v312, %v313
        %v315 = vrot.slane %v314, 2
        %v316 = vadd.f32 %v314, %v315
        %v317 = vrot.slane %v316, 1
        %v318 = vadd.f32 %v316, %v317
        %v319 = vsub.f32 1.0, %v291
        %v320 = vsub.f32 1.0, %v292
        %v321 = vmul.f32 %v319, %v319
        %v322 = vmul.f32 %v320, %v320
        %v323 = vsub.f32 0.0, %v311
        %v324 = vsub.f32 0.0, %v318
        %v325 = vmul.f32 %v323, %v321
        %v326 = vmul.f32 %v324, %v322
        %v327 = vmul.f32 %v325, %v294
        %v328 = vmul.f32 %v326, %v296
        %v329 = vld [vmem:[#allocation2] sm:$0x3]
        %v330 = vsel %vm289, %v327, 0.0
        %v331 = vsel %vm290, %v328, 0.0
        %v334 = vrot.slane %v331, 7
        %vm335 = vcmask 1040384
        %v336 = vsel %vm335, %v330, %v334
        %v338 = vadd.f32 %v329, %v336
        %v339 = vlaneseq
        %vm340 = vcmp.ge.s32.totalorder %v339, 0
        %vm341 = vcmp.lt.s32.totalorder %v339, 256
        %vm342 = vmand %vm340, %vm341
        %343 = vst.msk [vmem:[#allocation2] sm:$0x3] %vm342, %v338
        // Predicated region
        $region41: #{tpu_custom_call.1} parent=31 // pred_check
          %p344 = pneg %p238
        $region42: #{tpu_custom_call.1} parent=31 // pred_check_branch
          %346 = sbr.rel (%p344) target = $region44
        $region43: #{tpu_custom_call.1} parent=31 // pred_region
          %v347 = vld [vmem:[#allocation2] sm:$0x3]
          %v349 = vperm.slane %v347, 0
          %v350 = vperm.slane %v347, 1
          %v353 = vsel %vm335, %v349, 0.0
          %v354 = vsel %vm335, %v350, 0.0
          %v355 = vadd.f32 %v353, %v354
          %356 = vadd.xlane.f32.xlu0 %v355
          %v357 = vpop.xlane.xlu0 %356
          %v358 = vrot.slane %v357, 4
          %v359 = vadd.f32 %v357, %v358
          %v360 = vrot.slane %v359, 2
          %v361 = vadd.f32 %v359, %v360
          %v362 = vrot.slane %v361, 1
          %v363 = vadd.f32 %v361, %v362
          %s364 = vtos %v363
          %v365 = vstv %s364
          %366 = vst [vmem:[%s227] sm:$0x1] %v365
        $region44: #{tpu_custom_call.1} parent=31 // pred_fallthru
          _
        %s367 = sand.u32 %s117, 1
        %s368 = scalar_lea.sflag [#allocation5], %s367
        %s369 = sand.u32 %s117, 1
        %s370 = scalar_lea.vmem [#allocation6], %s369
        // Predicated region
        $region45: #{tpu_custom_call.1} parent=31 // pred_check
          %p371 = pneg %p127
        $region46: #{tpu_custom_call.1} parent=31 // pred_check_branch
          %373 = sbr.rel (%p371) target = $region48
        $region47: #{tpu_custom_call.1} parent=31 // pred_region
          %375 = vsyncadd %s368, 0
          %s376 = scalar_lea.hbm %s3, %s24
          %s378 = sshll.u32 %s370, 4
          %s379 = int_to_ptr.vmem [resolvable:$true] %s378
          %s380 = sshll.u32 %s376, 4
          %s381 = int_to_ptr.hbm [resolvable:$true] %s380
          %383 = dma.vmem_to_hbm [thread:$0]  %s379, 16, %s381, %s368
        $region48: #{tpu_custom_call.1} parent=31 // pred_fallthru
          _
      $region32: #{tpu_custom_call.1} parent=5 // pred_fallthru
        _
      %p384 = scmp.le.s32.totalorder 2, %s15
      // Predicated region
      $region49: #{tpu_custom_call.1} parent=5 // pred_check
        %p385 = pneg %p384
      $region50: #{tpu_custom_call.1} parent=5 // pred_check_branch
        %387 = sbr.rel (%p385) target = $region52
      $region51: #{tpu_custom_call.1} parent=5 // pred_region
        %s388 = ssub.s32 %s15, 2
        // Predicated region
        $region53: #{tpu_custom_call.1} parent=51 // pred_check
          %p389 = pneg %p133
        $region54: #{tpu_custom_call.1} parent=51 // pred_check_branch
          %391 = sbr.rel (%p389) target = $region56
        $region55: #{tpu_custom_call.1} parent=51 // pred_region
          %s392 = sand.u32 %s118, 1
          %s393 = scalar_lea.sflag [#allocation5], %s392
          %s394 = sand.u32 %s118, 1
          %s395 = scalar_lea.vmem [#allocation6], %s394
          %397 = dma.done %s393, 16
        $region56: #{tpu_custom_call.1} parent=51 // pred_fallthru
          _
      $region52: #{tpu_custom_call.1} parent=5 // pred_fallthru
        _
    $region6: #{tpu_custom_call.1} parent=1 // loop_footer
      %s19 = sadd.s32 1, %s15
    $region7: #{tpu_custom_call.1} parent=1 // loop_footer_branch
      %14 = sbr.rel target = $region3
    $region8: #{tpu_custom_call.1} parent=1 // loop_exit
      _
    %398 = vsyncpa [#allocation4], 1
    %s399 = scalar_lea.sflag [#allocation4], 1
    %400 = vsyncpa %s399, 1
    %401 = vsyncpa [#allocation5], 1
    %s402 = scalar_lea.sflag [#allocation5], 1
    %403 = vsyncpa %s402, 1

</llo_original>
